<compile_context>
chip_gen: v7x
topology: tpu7x:2x2x1
jax: 0.10.0
libtpu: 0.0.40
codegen_flags: <defaults>
</compile_context>

<pallas_src>
import functools
import numpy as np
import jax
import jax.numpy as jnp
from jax.experimental import pallas as pl
from jax.experimental.pallas import tpu as pltpu


CLASS_COUNTS = {0: 2286, 1: 1046, 2: 1516, 3: 757, 4: 173}


def build_loss_constants(class_counts):
    """Deterministic re-implementation of ClassificationOnlyLoss.__init__."""
    num_classes = len(class_counts)
    counts = np.array([class_counts[i] for i in range(num_classes)], dtype=np.float32)
    total = counts.sum()
    median = np.sort(counts)[(num_classes - 1) // 2]       # torch.median -> lower median
    alpha = total / (counts * num_classes)
    alpha = np.where(counts < median * 0.1, alpha * 2.5,
                     np.where(counts < median * 0.4, alpha * 1.8, alpha))
    alpha = alpha / alpha.sum() * num_classes
    rare = (counts < median * 0.4).astype(np.float32)      # 1.0 -> rare class
    return np.asarray(alpha, np.float32), np.asarray(rare, np.float32)


def _loss_kernel(tgt_ref, cls_ref, *rest, alpha, rare, gamma, num_aux):
    """One batch tile.

    tgt_ref : (S, 128) int32 targets; -1 marks padding / out-of-range samples.
    cls_ref : (C, S, 128) classification logits, class-major (sublane/lane dense).
    rest    : num_aux aux-logit refs of shape (C, S, 128), then the (5, AR, 128)
              raw-sum output block (resident across the inner reduction axis).
    """
    aux_refs = rest[:num_aux]
    out_ref = rest[num_aux]

    i = pl.program_id(1)
    C, S = cls_ref.shape[0], cls_ref.shape[1]
    AR = out_ref.shape[1]

    @pl.when(i == 0)
    def _init():
        out_ref[...] = jnp.zeros_like(out_ref)

    tgt = tgt_ref[...]                                    # (S,128) int32
    valid = tgt >= 0                                      # False on padding / OOB tail
    mkb = [tgt == c for c in range(C)]                    # per-class masks (reused)
    mkf = [m.astype(jnp.float32) for m in mkb]

    # alpha[target] / rare[target] from baked-in compile-time constants (no gather).
    alpha_t = mkf[0] * jnp.float32(alpha[0])
    for c in range(1, C):
        alpha_t = alpha_t + mkf[c] * jnp.float32(alpha[c])
    rare_cls = [c for c in range(C) if rare[c] > 0.0]
    if rare_cls:
        rare_t = mkf[rare_cls[0]]
        for c in rare_cls[1:]:
            rare_t = rare_t + mkf[c]
    else:
        rare_t = jnp.zeros_like(alpha_t)

    def target_logprob(ref):
        """log softmax(ref)[target] as (S,128); 0 where target is padding.

        The class axis is the small leading axis, so max/sum over classes are C
        unrolled elementwise ops.  where-selects (not multiplies) keep NaN/Inf
        garbage in the ragged OOB tail (where target == -1) out of the sums.
        """
        xs = [ref[c].astype(jnp.float32) for c in range(C)]
        m = xs[0]
        for c in range(1, C):
            m = jnp.maximum(m, xs[c])
        zs = [x - m for x in xs]
        se = jnp.exp(zs[0])
        for c in range(1, C):
            se = se + jnp.exp(zs[c])
        lse = jnp.log(se)
        zt = jnp.where(mkb[0], zs[0], 0.0)
        for c in range(1, C):
            zt = zt + jnp.where(mkb[c], zs[c], 0.0)
        return jnp.where(valid, zt - lse, 0.0)

    tlog = target_logprob(cls_ref)             # logp[target] (<= 0); 0 on padding
    tpt = jnp.exp(tlog)                        # softmax prob of target (1.0 on padding)
    p = 1.0 - tpt                              # 0.0 on padding
    if gamma == 2.0:
        pw = p * p
    else:
        # For p == 0 this is ~1e-30**gamma instead of exactly 0; harmless since it
        # multiplies tlog == 0 there.
        pw = jnp.exp(jnp.float32(gamma) * jnp.log(jnp.maximum(p, 1e-30)))
    scale = 1.0 + 0.5 * rare_t                 # 1.5 on rare samples, 1.0 otherwise

    def fold(x):
        """Pre-reduce an (S,128) contribution to (AR,128) before the accumulator RMW."""
        if AR == S:
            return x
        a = x[0:AR]
        for k in range(1, S // AR):
            a = a + x[k * AR:(k + 1) * AR]
        return a

    out_ref[0] += fold(alpha_t)                # sum_j alpha[target_j]
    out_ref[1] += fold(scale * pw * tlog)      # sum_i scale_i * (1-pt_i)^g * logp_i[t_i]
    out_ref[2] += fold(rare_t * (-tlog))       # sum over rare samples of -log(pt[t])
    out_ref[3] += fold(rare_t)                 # number of rare samples
    if num_aux > 0:
        nll = jnp.zeros_like(alpha_t)
        for aref in aux_refs:                  # small static number of aux heads
            nll = nll - target_logprob(aref)   # per-head cross-entropy NLL
        out_ref[4] += fold(alpha_t * nll)      # sum_a sum_i alpha[t_i] * nll_a[i]


def classification_only_loss(model_outputs, targets, alpha, rare_mask,
                             gamma=2.0, aux_weight=0.3, rare_bonus=0.3,
                             block_b=16384, num_partials=2):
    """Forward pass of ClassificationOnlyLoss (returns a scalar loss).

    `rare_bonus` is the literal 0.3 rare-row bonus in the reference forward; it is
    intentionally independent of `aux_weight`.
    """
    # Tuple unpacking glue, mirroring the PyTorch forward.
    if isinstance(model_outputs, tuple) and len(model_outputs) >= 4:
        _, cls_out, _, aux_cls_outputs, _ = model_outputs
    else:
        _, cls_out, _ = model_outputs
        aux_cls_outputs = None
    aux_list = list(aux_cls_outputs) if aux_cls_outputs else []
    num_aux = len(aux_list)

    B, C = cls_out.shape
    # alpha / rare_mask are configuration constants -> bake into the kernel.
    alpha_c = tuple(float(v) for v in np.asarray(alpha, np.float32).reshape(-1))
    rare_c = tuple(float(v) for v in np.asarray(rare_mask, np.float32).reshape(-1))
    assert len(alpha_c) == C and len(rare_c) == C

    # ---- tiling: samples are (sublane, lane) dense as (rows of 128, 128) ----
    B128 = -(-B // 128)                        # number of 128-sample rows
    Bp = B128 * 128                            # batch padded to a lane multiple
    P = max(1, int(num_partials))
    blk = max(1024, min(int(block_b), 65536))  # cap tile size (VMEM headroom on v7x)
    S_req = max(8, (blk // 128 // 8) * 8)      # requested rows per tile (multiple of 8)
    if B128 <= 8:
        S = B128                               # tiny batch: one block == full extent
    else:
        per_part = -(-B128 // P)               # keep >= P tiles so both TCs work (v7x)
        per_part = ((per_part + 7) // 8) * 8
        S = max(8, min(S_req, per_part))
    tiles = -(-B128 // S)                      # real tiles along the row axis
    P = max(1, min(P, tiles))
    NB = -(-tiles // P)                        # inner (reduction) grid extent
    R = P * NB * S                             # rows covered by the grid (>= B128)
    AR = 8 if (S % 8 == 0 and S >= 8) else S   # accumulator rows (pre-folded)

    # ---- inputs ----
    # Targets padded with -1 to the full grid coverage (tiny int copy); padded /
    # out-of-range samples contribute exactly zero in-kernel.
    tgt = jnp.pad(jnp.asarray(targets, jnp.int32), (0, R * 128 - B),
                  constant_values=-1).reshape(R, 128)

    def to_class_major(x):                     # (B, C) -> (C, B128, 128); reshape is free
        xt = jnp.transpose(x, (1, 0))
        if Bp != B:
            xt = jnp.pad(xt, ((0, 0), (0, Bp - B)))
        return xt.reshape(C, B128, 128)

    tmap = lambda p, i: (p * NB + i, 0)
    last_blk = tiles - 1
    # Clamp so no float block *starts* out of bounds; duplicated blocks see only
    # target == -1 rows, hence contribute zero.
    fmap = lambda p, i: (0, jnp.minimum(p * NB + i, last_blk), 0)

    in_specs = [pl.BlockSpec((S, 128), tmap),
                pl.BlockSpec((C, S, 128), fmap)]
    args = [tgt, to_class_major(cls_out)]
    for a in aux_list:                         # each aux head is its own input (no stack copy)
        in_specs.append(pl.BlockSpec((C, S, 128), fmap))
        args.append(to_class_major(a))

    kernel = functools.partial(_loss_kernel, alpha=alpha_c, rare=rare_c,
                               gamma=float(gamma), num_aux=num_aux)

    parts = pl.pallas_call(
        kernel,
        out_shape=jax.ShapeDtypeStruct((5, P * AR, 128), jnp.float32),
        grid_spec=pltpu.PrefetchScalarGridSpec(
            num_scalar_prefetch=0,
            grid=(P, NB),
            in_specs=in_specs,
            out_specs=pl.BlockSpec((5, AR, 128), lambda p, i: (0, p, 0)),
        ),
        compiler_params=pltpu.CompilerParams(
            dimension_semantics=("parallel", "arbitrary"),
            vmem_limit_bytes=32 * 1024 * 1024),
    )(*args)

    # ---- combine the per-partial raw sums (5 numbers) in the wrapper ----
    s = jnp.sum(parts, axis=(1, 2))
    s_alpha, s_focal, s_rn, n_rare, s_aux = s[0], s[1], s[2], s[3], s[4]
    bf = jnp.float32(B)
    aux_rare = s_rn / jnp.maximum(n_rare, 1.0)
    # focal_loss.mean() with the reference's (B,B) broadcast, factored rank-1 and
    # normalized by B before the product (f32-friendly for very large B).
    main_loss = (-(s_alpha / bf) * (s_focal / bf)
                 + jnp.float32(rare_bonus) * aux_rare * (n_rare / bf))
    loss = main_loss
    if num_aux > 0 and float(aux_weight) != 0.0:
        loss = loss + jnp.float32(aux_weight) * s_aux / (s_alpha * jnp.float32(num_aux))
    return loss


def _ref_loss(cls_out, aux_list, targets, alpha, rare_mask, gamma, aux_weight,
              rare_bonus=0.3):
    """Pure-JAX reference mirroring the PyTorch code (incl. the (B,B) broadcast)."""
    alpha_j = jnp.asarray(alpha, jnp.float32)
    rare_j = jnp.asarray(rare_mask, jnp.float32)
    logit = jax.nn.log_softmax(cls_out.astype(jnp.float32), axis=1)
    pt = jnp.exp(logit)
    tpt = jnp.take_along_axis(pt, targets[:, None], axis=1)       # (B, 1)
    tlog = jnp.take_along_axis(logit, targets[:, None], axis=1)   # (B, 1)
    a_t = alpha_j[targets]                                        # (B,)
    fl = -a_t * (1.0 - tpt) ** gamma * tlog                       # (B, B) broadcast quirk
    rare = rare_j[targets] > 0
    fl = jnp.where(rare[:, None], 1.5 * fl, fl)
    n_rare = jnp.sum(rare)
    aux_rare = jnp.sum(jnp.where(rare[:, None], -jnp.log(tpt), 0.0)) / jnp.maximum(n_rare, 1)
    fl = jnp.where(rare[:, None], fl + rare_bonus * aux_rare, fl)
    main = fl.mean()
    if not aux_list:
        return main
    aux_loss = 0.0
    for a in aux_list:
        lp = jax.nn.log_softmax(a.astype(jnp.float32), axis=1)
        nll = -jnp.take_along_axis(lp, targets[:, None], axis=1)[:, 0]
        aux_loss = aux_loss + jnp.sum(a_t * nll) / jnp.sum(a_t)
    aux_loss = aux_loss / len(aux_list)
    return main + aux_weight * aux_loss


if __name__ == "__main__":
    alpha, rare_mask = build_loss_constants(CLASS_COUNTS)
    C = len(CLASS_COUNTS)

    # --- case 1: tiny batch, single tile, two aux heads, f32 ---
    B = 8
    k1, k2, k3, k4 = jax.random.split(jax.random.PRNGKey(0), 4)
    cls_out = jax.random.normal(k1, (B, C), jnp.float32)
    aux1 = jax.random.normal(k2, (B, C), jnp.float32)
    aux2 = jax.random.normal(k3, (B, C), jnp.float32)
    targets = jax.random.randint(k4, (B,), 0, C, jnp.int32).at[-1].set(4)  # ensure rare class
    mo1 = (None, cls_out, None, [aux1, aux2], None)
    loss1 = jax.block_until_ready(
        classification_only_loss(mo1, targets, alpha, rare_mask))
    ref1 = _ref_loss(cls_out, [aux1, aux2], targets, alpha, rare_mask, 2.0, 0.3)
    assert jnp.allclose(loss1, ref1, rtol=1e-4, atol=1e-5), (loss1, ref1)

    # --- case 2: gridded batch with ragged tail + duplicated OOB block,
    #     2 partials (megacore path), bf16 logits ---
    B2 = 1300
    k5, k6, k7, k8 = jax.random.split(jax.random.PRNGKey(1), 4)
    cls2 = (2.0 * jax.random.normal(k5, (B2, C), jnp.float32)).astype(jnp.bfloat16)
    aux2a = jax.random.normal(k6, (B2, C), jnp.float32).astype(jnp.bfloat16)
    aux2b = jax.random.normal(k7, (B2, C), jnp.float32).astype(jnp.bfloat16)
    tgt2 = jax.random.randint(k8, (B2,), 0, C, jnp.int32).at[0].set(4)
    mo2 = (None, cls2, None, [aux2a, aux2b], None)
    loss2 = jax.block_until_ready(
        classification_only_loss(mo2, tgt2, alpha, rare_mask,
                                 block_b=1024, num_partials=2))
    ref2 = _ref_loss(cls2.astype(jnp.float32),
                     [aux2a.astype(jnp.float32), aux2b.astype(jnp.float32)],
                     tgt2, alpha, rare_mask, 2.0, 0.3)
    assert jnp.allclose(loss2, ref2, rtol=2e-4, atol=2e-4), (loss2, ref2)

    # --- case 3: no auxiliary heads, multi-chunk fold (S=16 -> AR=8), f32 ---
    B3 = 4096
    k9, k10 = jax.random.split(jax.random.PRNGKey(2), 2)
    cls3 = jax.random.normal(k9, (B3, C), jnp.float32)
    tgt3 = jax.random.randint(k10, (B3,), 0, C, jnp.int32)
    mo3 = (None, cls3, None)
    loss3 = jax.block_until_ready(
        classification_only_loss(mo3, tgt3, alpha, rare_mask,
                                 block_b=2048, num_partials=2))
    ref3 = _ref_loss(cls3, [], tgt3, alpha, rare_mask, 2.0, 0.3)
    assert jnp.allclose(loss3, ref3, rtol=1e-4, atol=1e-4), (loss3, ref3)

    print("KERNEL_OK")
</pallas_src>

<mosaic_0001>
module attributes {stable_mosaic.version = 11 : i64} {
  func.func @_loss_kernel(%arg0: i32, %arg1: i32, %arg2: memref<1x128xi32, #tpu.memory_space<vmem>>, %arg3: memref<5x1x128xf32, #tpu.memory_space<vmem>>, %arg4: memref<5x1x128xf32, #tpu.memory_space<vmem>>, %arg5: memref<5x1x128xf32, #tpu.memory_space<vmem>>, %arg6: memref<5x1x128xf32, #tpu.memory_space<vmem>>) attributes {dimension_semantics = [#tpu.dimension_semantics<parallel>, #tpu.dimension_semantics<arbitrary>], iteration_bounds = array<i64: 1, 1>, scalar_prefetch = 0 : i64, scratch_operands = 0 : i64, tpu.core_type = #tpu.core_type<tc>, window_params = [{transform_indices = @transform_0, window_bounds = array<i64: 1, 128>}, {transform_indices = @transform_1, window_bounds = array<i64: 5, 1, 128>}, {transform_indices = @transform_2, window_bounds = array<i64: 5, 1, 128>}, {transform_indices = @transform_3, window_bounds = array<i64: 5, 1, 128>}, {transform_indices = @transform_4, window_bounds = array<i64: 5, 1, 128>}]} {
    %c0_i32 = arith.constant 0 : i32
    %0 = arith.cmpi eq, %arg1, %c0_i32 : i32
    %1 = arith.extui %0 : i1 to i32
    %c0_i32_0 = arith.constant 0 : i32
    %2 = arith.cmpi ne, %1, %c0_i32_0 : i32
    scf.if %2 {
      %cst_102 = arith.constant 0.000000e+00 : f32
      %225 = vector.broadcast %cst_102 : f32 to vector<5x1x128xf32>
      %c0_103 = arith.constant 0 : index
      %c0_104 = arith.constant 0 : index
      %c0_105 = arith.constant 0 : index
      %226 = vector.load %arg6[%c0_103, %c0_104, %c0_105] : memref<5x1x128xf32, #tpu.memory_space<vmem>>, vector<5x1x128xf32>
      tpu.vector_store %arg6[%c0_103, %c0_104, %c0_105], %225 {strides = array<i32>} : memref<5x1x128xf32, #tpu.memory_space<vmem>>, vector<5x1x128xf32>,
    } else {
    }
    %c0 = arith.constant 0 : index
    %c0_1 = arith.constant 0 : index
    %3 = vector.load %arg2[%c0, %c0_1] : memref<1x128xi32, #tpu.memory_space<vmem>>, vector<1x128xi32>
    %c0_i32_2 = arith.constant 0 : i32
    %4 = vector.broadcast %c0_i32_2 : i32 to vector<1x128xi32>
    %5 = arith.cmpi sge, %3, %4 : vector<1x128xi32>
    %c0_i32_3 = arith.constant 0 : i32
    %6 = vector.broadcast %c0_i32_3 : i32 to vector<1x128xi32>
    %7 = arith.cmpi eq, %3, %6 : vector<1x128xi32>
    %c1_i32 = arith.constant 1 : i32
    %8 = vector.broadcast %c1_i32 : i32 to vector<1x128xi32>
    %9 = arith.cmpi eq, %3, %8 : vector<1x128xi32>
    %c2_i32 = arith.constant 2 : i32
    %10 = vector.broadcast %c2_i32 : i32 to vector<1x128xi32>
    %11 = arith.cmpi eq, %3, %10 : vector<1x128xi32>
    %c3_i32 = arith.constant 3 : i32
    %12 = vector.broadcast %c3_i32 : i32 to vector<1x128xi32>
    %13 = arith.cmpi eq, %3, %12 : vector<1x128xi32>
    %c4_i32 = arith.constant 4 : i32
    %14 = vector.broadcast %c4_i32 : i32 to vector<1x128xi32>
    %15 = arith.cmpi eq, %3, %14 : vector<1x128xi32>
    %16 = arith.extui %7 : vector<1x128xi1> to vector<1x128xi32>
    %17 = arith.sitofp %16 : vector<1x128xi32> to vector<1x128xf32>
    %18 = arith.extui %9 : vector<1x128xi1> to vector<1x128xi32>
    %19 = arith.sitofp %18 : vector<1x128xi32> to vector<1x128xf32>
    %20 = arith.extui %11 : vector<1x128xi1> to vector<1x128xi32>
    %21 = arith.sitofp %20 : vector<1x128xi32> to vector<1x128xf32>
    %22 = arith.extui %13 : vector<1x128xi1> to vector<1x128xi32>
    %23 = arith.sitofp %22 : vector<1x128xi32> to vector<1x128xf32>
    %24 = arith.extui %15 : vector<1x128xi1> to vector<1x128xi32>
    %25 = arith.sitofp %24 : vector<1x128xi32> to vector<1x128xf32>
    %cst = arith.constant 0.158739388 : f32
    %26 = vector.broadcast %cst : f32 to vector<1x128xf32>
    %27 = arith.mulf %17, %26 : vector<1x128xf32>
    %cst_4 = arith.constant 0.346919894 : f32
    %28 = vector.broadcast %cst_4 : f32 to vector<1x128xf32>
    %29 = arith.mulf %19, %28 : vector<1x128xf32>
    %30 = arith.addf %27, %29 : vector<1x128xf32>
    %cst_5 = arith.constant 0.239365578 : f32
    %31 = vector.broadcast %cst_5 : f32 to vector<1x128xf32>
    %32 = arith.mulf %21, %31 : vector<1x128xf32>
    %33 = arith.addf %30, %32 : vector<1x128xf32>
    %cst_6 = arith.constant 0.479363561 : f32
    %34 = vector.broadcast %cst_6 : f32 to vector<1x128xf32>
    %35 = arith.mulf %23, %34 : vector<1x128xf32>
    %36 = arith.addf %33, %35 : vector<1x128xf32>
    %cst_7 = arith.constant 3.7756114 : f32
    %37 = vector.broadcast %cst_7 : f32 to vector<1x128xf32>
    %38 = arith.mulf %25, %37 : vector<1x128xf32>
    %39 = arith.addf %36, %38 : vector<1x128xf32>
    %c0_8 = arith.constant 0 : index
    %c0_9 = arith.constant 0 : index
    %c0_10 = arith.constant 0 : index
    %40 = vector.load %arg3[%c0_8, %c0_9, %c0_10] : memref<5x1x128xf32, #tpu.memory_space<vmem>>, vector<1x1x128xf32>
    %41 = vector.shape_cast %40 : vector<1x1x128xf32> to vector<1x128xf32>
    %c1 = arith.constant 1 : index
    %c0_11 = arith.constant 0 : index
    %c0_12 = arith.constant 0 : index
    %42 = vector.load %arg3[%c1, %c0_11, %c0_12] : memref<5x1x128xf32, #tpu.memory_space<vmem>>, vector<1x1x128xf32>
    %43 = vector.shape_cast %42 : vector<1x1x128xf32> to vector<1x128xf32>
    %c2 = arith.constant 2 : index
    %c0_13 = arith.constant 0 : index
    %c0_14 = arith.constant 0 : index
    %44 = vector.load %arg3[%c2, %c0_13, %c0_14] : memref<5x1x128xf32, #tpu.memory_space<vmem>>, vector<1x1x128xf32>
    %45 = vector.shape_cast %44 : vector<1x1x128xf32> to vector<1x128xf32>
    %c3 = arith.constant 3 : index
    %c0_15 = arith.constant 0 : index
    %c0_16 = arith.constant 0 : index
    %46 = vector.load %arg3[%c3, %c0_15, %c0_16] : memref<5x1x128xf32, #tpu.memory_space<vmem>>, vector<1x1x128xf32>
    %47 = vector.shape_cast %46 : vector<1x1x128xf32> to vector<1x128xf32>
    %c4 = arith.constant 4 : index
    %c0_17 = arith.constant 0 : index
    %c0_18 = arith.constant 0 : index
    %48 = vector.load %arg3[%c4, %c0_17, %c0_18] : memref<5x1x128xf32, #tpu.memory_space<vmem>>, vector<1x1x128xf32>
    %49 = vector.shape_cast %48 : vector<1x1x128xf32> to vector<1x128xf32>
    %50 = arith.maximumf %41, %43 : vector<1x128xf32>
    %51 = arith.maximumf %50, %45 : vector<1x128xf32>
    %52 = arith.maximumf %51, %47 : vector<1x128xf32>
    %53 = arith.maximumf %52, %49 : vector<1x128xf32>
    %54 = arith.subf %41, %53 : vector<1x128xf32>
    %55 = arith.subf %43, %53 : vector<1x128xf32>
    %56 = arith.subf %45, %53 : vector<1x128xf32>
    %57 = arith.subf %47, %53 : vector<1x128xf32>
    %58 = arith.subf %49, %53 : vector<1x128xf32>
    %59 = math.exp %54 : vector<1x128xf32>
    %60 = math.exp %55 : vector<1x128xf32>
    %61 = arith.addf %59, %60 : vector<1x128xf32>
    %62 = math.exp %56 : vector<1x128xf32>
    %63 = arith.addf %61, %62 : vector<1x128xf32>
    %64 = math.exp %57 : vector<1x128xf32>
    %65 = arith.addf %63, %64 : vector<1x128xf32>
    %66 = math.exp %58 : vector<1x128xf32>
    %67 = arith.addf %65, %66 : vector<1x128xf32>
    %68 = math.log %67 : vector<1x128xf32>
    %cst_19 = arith.constant 0.000000e+00 : f32
    %69 = vector.broadcast %cst_19 : f32 to vector<1x128xf32>
    %70 = arith.select %7, %54, %69 : vector<1x128xi1>, vector<1x128xf32>
    %cst_20 = arith.constant 0.000000e+00 : f32
    %71 = vector.broadcast %cst_20 : f32 to vector<1x128xf32>
    %72 = arith.select %9, %55, %71 : vector<1x128xi1>, vector<1x128xf32>
    %73 = arith.addf %70, %72 : vector<1x128xf32>
    %cst_21 = arith.constant 0.000000e+00 : f32
    %74 = vector.broadcast %cst_21 : f32 to vector<1x128xf32>
    %75 = arith.select %11, %56, %74 : vector<1x128xi1>, vector<1x128xf32>
    %76 = arith.addf %73, %75 : vector<1x128xf32>
    %cst_22 = arith.constant 0.000000e+00 : f32
    %77 = vector.broadcast %cst_22 : f32 to vector<1x128xf32>
    %78 = arith.select %13, %57, %77 : vector<1x128xi1>, vector<1x128xf32>
    %79 = arith.addf %76, %78 : vector<1x128xf32>
    %cst_23 = arith.constant 0.000000e+00 : f32
    %80 = vector.broadcast %cst_23 : f32 to vector<1x128xf32>
    %81 = arith.select %15, %58, %80 : vector<1x128xi1>, vector<1x128xf32>
    %82 = arith.addf %79, %81 : vector<1x128xf32>
    %83 = arith.subf %82, %68 : vector<1x128xf32>
    %cst_24 = arith.constant 0.000000e+00 : f32
    %84 = vector.broadcast %cst_24 : f32 to vector<1x128xf32>
    %85 = arith.select %5, %83, %84 : vector<1x128xi1>, vector<1x128xf32>
    %86 = math.exp %85 : vector<1x128xf32>
    %cst_25 = arith.constant 1.000000e+00 : f32
    %87 = vector.broadcast %cst_25 : f32 to vector<1x128xf32>
    %88 = arith.subf %87, %86 : vector<1x128xf32>
    %89 = arith.mulf %88, %88 : vector<1x128xf32>
    %cst_26 = arith.constant 5.000000e-01 : f32
    %90 = vector.broadcast %cst_26 : f32 to vector<1x128xf32>
    %91 = arith.mulf %90, %25 : vector<1x128xf32>
    %cst_27 = arith.constant 1.000000e+00 : f32
    %92 = vector.broadcast %cst_27 : f32 to vector<1x128xf32>
    %93 = arith.addf %92, %91 : vector<1x128xf32>
    %c0_28 = arith.constant 0 : index
    %c0_29 = arith.constant 0 : index
    %c0_30 = arith.constant 0 : index
    %94 = vector.load %arg6[%c0_28, %c0_29, %c0_30] : memref<5x1x128xf32, #tpu.memory_space<vmem>>, vector<1x1x128xf32>
    %95 = vector.shape_cast %94 : vector<1x1x128xf32> to vector<1x128xf32>
    %96 = arith.addf %95, %39 : vector<1x128xf32>
    %c0_31 = arith.constant 0 : index
    %c0_32 = arith.constant 0 : index
    %c0_33 = arith.constant 0 : index
    %97 = vector.load %arg6[%c0_31, %c0_32, %c0_33] : memref<5x1x128xf32, #tpu.memory_space<vmem>>, vector<1x1x128xf32>
    %98 = vector.shape_cast %97 : vector<1x1x128xf32> to vector<1x128xf32>
    %99 = vector.shape_cast %96 : vector<1x128xf32> to vector<1x1x128xf32>
    tpu.vector_store %arg6[%c0_31, %c0_32, %c0_33], %99 {strides = array<i32>} : memref<5x1x128xf32, #tpu.memory_space<vmem>>, vector<1x1x128xf32>,
    %c1_34 = arith.constant 1 : index
    %c0_35 = arith.constant 0 : index
    %c0_36 = arith.constant 0 : index
    %100 = vector.load %arg6[%c1_34, %c0_35, %c0_36] : memref<5x1x128xf32, #tpu.memory_space<vmem>>, vector<1x1x128xf32>
    %101 = vector.shape_cast %100 : vector<1x1x128xf32> to vector<1x128xf32>
    %102 = arith.mulf %93, %89 : vector<1x128xf32>
    %103 = arith.mulf %102, %85 : vector<1x128xf32>
    %104 = arith.addf %101, %103 : vector<1x128xf32>
    %c1_37 = arith.constant 1 : index
    %c0_38 = arith.constant 0 : index
    %c0_39 = arith.constant 0 : index
    %105 = vector.load %arg6[%c1_37, %c0_38, %c0_39] : memref<5x1x128xf32, #tpu.memory_space<vmem>>, vector<1x1x128xf32>
    %106 = vector.shape_cast %105 : vector<1x1x128xf32> to vector<1x128xf32>
    %107 = vector.shape_cast %104 : vector<1x128xf32> to vector<1x1x128xf32>
    tpu.vector_store %arg6[%c1_37, %c0_38, %c0_39], %107 {strides = array<i32>} : memref<5x1x128xf32, #tpu.memory_space<vmem>>, vector<1x1x128xf32>,
    %c2_40 = arith.constant 2 : index
    %c0_41 = arith.constant 0 : index
    %c0_42 = arith.constant 0 : index
    %108 = vector.load %arg6[%c2_40, %c0_41, %c0_42] : memref<5x1x128xf32, #tpu.memory_space<vmem>>, vector<1x1x128xf32>
    %109 = vector.shape_cast %108 : vector<1x1x128xf32> to vector<1x128xf32>
    %cst_43 = arith.constant 0.000000e+00 : f32
    %110 = vector.broadcast %cst_43 : f32 to vector<1x128xf32>
    %111 = arith.subf %110, %85 : vector<1x128xf32>
    %112 = arith.mulf %25, %111 : vector<1x128xf32>
    %113 = arith.addf %109, %112 : vector<1x128xf32>
    %c2_44 = arith.constant 2 : index
    %c0_45 = arith.constant 0 : index
    %c0_46 = arith.constant 0 : index
    %114 = vector.load %arg6[%c2_44, %c0_45, %c0_46] : memref<5x1x128xf32, #tpu.memory_space<vmem>>, vector<1x1x128xf32>
    %115 = vector.shape_cast %114 : vector<1x1x128xf32> to vector<1x128xf32>
    %116 = vector.shape_cast %113 : vector<1x128xf32> to vector<1x1x128xf32>
    tpu.vector_store %arg6[%c2_44, %c0_45, %c0_46], %116 {strides = array<i32>} : memref<5x1x128xf32, #tpu.memory_space<vmem>>, vector<1x1x128xf32>,
    %c3_47 = arith.constant 3 : index
    %c0_48 = arith.constant 0 : index
    %c0_49 = arith.constant 0 : index
    %117 = vector.load %arg6[%c3_47, %c0_48, %c0_49] : memref<5x1x128xf32, #tpu.memory_space<vmem>>, vector<1x1x128xf32>
    %118 = vector.shape_cast %117 : vector<1x1x128xf32> to vector<1x128xf32>
    %119 = arith.addf %118, %25 : vector<1x128xf32>
    %c3_50 = arith.constant 3 : index
    %c0_51 = arith.constant 0 : index
    %c0_52 = arith.constant 0 : index
    %120 = vector.load %arg6[%c3_50, %c0_51, %c0_52] : memref<5x1x128xf32, #tpu.memory_space<vmem>>, vector<1x1x128xf32>
    %121 = vector.shape_cast %120 : vector<1x1x128xf32> to vector<1x128xf32>
    %122 = vector.shape_cast %119 : vector<1x128xf32> to vector<1x1x128xf32>
    tpu.vector_store %arg6[%c3_50, %c0_51, %c0_52], %122 {strides = array<i32>} : memref<5x1x128xf32, #tpu.memory_space<vmem>>, vector<1x1x128xf32>,
    %cst_53 = arith.constant 0.000000e+00 : f32
    %123 = vector.broadcast %cst_53 : f32 to vector<1x128xf32>
    %c0_54 = arith.constant 0 : index
    %c0_55 = arith.constant 0 : index
    %c0_56 = arith.constant 0 : index
    %124 = vector.load %arg4[%c0_54, %c0_55, %c0_56] : memref<5x1x128xf32, #tpu.memory_space<vmem>>, vector<1x1x128xf32>
    %125 = vector.shape_cast %124 : vector<1x1x128xf32> to vector<1x128xf32>
    %c1_57 = arith.constant 1 : index
    %c0_58 = arith.constant 0 : index
    %c0_59 = arith.constant 0 : index
    %126 = vector.load %arg4[%c1_57, %c0_58, %c0_59] : memref<5x1x128xf32, #tpu.memory_space<vmem>>, vector<1x1x128xf32>
    %127 = vector.shape_cast %126 : vector<1x1x128xf32> to vector<1x128xf32>
    %c2_60 = arith.constant 2 : index
    %c0_61 = arith.constant 0 : index
    %c0_62 = arith.constant 0 : index
    %128 = vector.load %arg4[%c2_60, %c0_61, %c0_62] : memref<5x1x128xf32, #tpu.memory_space<vmem>>, vector<1x1x128xf32>
    %129 = vector.shape_cast %128 : vector<1x1x128xf32> to vector<1x128xf32>
    %c3_63 = arith.constant 3 : index
    %c0_64 = arith.constant 0 : index
    %c0_65 = arith.constant 0 : index
    %130 = vector.load %arg4[%c3_63, %c0_64, %c0_65] : memref<5x1x128xf32, #tpu.memory_space<vmem>>, vector<1x1x128xf32>
    %131 = vector.shape_cast %130 : vector<1x1x128xf32> to vector<1x128xf32>
    %c4_66 = arith.constant 4 : index
    %c0_67 = arith.constant 0 : index
    %c0_68 = arith.constant 0 : index
    %132 = vector.load %arg4[%c4_66, %c0_67, %c0_68] : memref<5x1x128xf32, #tpu.memory_space<vmem>>, vector<1x1x128xf32>
    %133 = vector.shape_cast %132 : vector<1x1x128xf32> to vector<1x128xf32>
    %134 = arith.maximumf %125, %127 : vector<1x128xf32>
    %135 = arith.maximumf %134, %129 : vector<1x128xf32>
    %136 = arith.maximumf %135, %131 : vector<1x128xf32>
    %137 = arith.maximumf %136, %133 : vector<1x128xf32>
    %138 = arith.subf %125, %137 : vector<1x128xf32>
    %139 = arith.subf %127, %137 : vector<1x128xf32>
    %140 = arith.subf %129, %137 : vector<1x128xf32>
    %141 = arith.subf %131, %137 : vector<1x128xf32>
    %142 = arith.subf %133, %137 : vector<1x128xf32>
    %143 = math.exp %138 : vector<1x128xf32>
    %144 = math.exp %139 : vector<1x128xf32>
    %145 = arith.addf %143, %144 : vector<1x128xf32>
    %146 = math.exp %140 : vector<1x128xf32>
    %147 = arith.addf %145, %146 : vector<1x128xf32>
    %148 = math.exp %141 : vector<1x128xf32>
    %149 = arith.addf %147, %148 : vector<1x128xf32>
    %150 = math.exp %142 : vector<1x128xf32>
    %151 = arith.addf %149, %150 : vector<1x128xf32>
    %152 = math.log %151 : vector<1x128xf32>
    %cst_69 = arith.constant 0.000000e+00 : f32
    %153 = vector.broadcast %cst_69 : f32 to vector<1x128xf32>
    %154 = arith.select %7, %138, %153 : vector<1x128xi1>, vector<1x128xf32>
    %cst_70 = arith.constant 0.000000e+00 : f32
    %155 = vector.broadcast %cst_70 : f32 to vector<1x128xf32>
    %156 = arith.select %9, %139, %155 : vector<1x128xi1>, vector<1x128xf32>
    %157 = arith.addf %154, %156 : vector<1x128xf32>
    %cst_71 = arith.constant 0.000000e+00 : f32
    %158 = vector.broadcast %cst_71 : f32 to vector<1x128xf32>
    %159 = arith.select %11, %140, %158 : vector<1x128xi1>, vector<1x128xf32>
    %160 = arith.addf %157, %159 : vector<1x128xf32>
    %cst_72 = arith.constant 0.000000e+00 : f32
    %161 = vector.broadcast %cst_72 : f32 to vector<1x128xf32>
    %162 = arith.select %13, %141, %161 : vector<1x128xi1>, vector<1x128xf32>
    %163 = arith.addf %160, %162 : vector<1x128xf32>
    %cst_73 = arith.constant 0.000000e+00 : f32
    %164 = vector.broadcast %cst_73 : f32 to vector<1x128xf32>
    %165 = arith.select %15, %142, %164 : vector<1x128xi1>, vector<1x128xf32>
    %166 = arith.addf %163, %165 : vector<1x128xf32>
    %167 = arith.subf %166, %152 : vector<1x128xf32>
    %cst_74 = arith.constant 0.000000e+00 : f32
    %168 = vector.broadcast %cst_74 : f32 to vector<1x128xf32>
    %169 = arith.select %5, %167, %168 : vector<1x128xi1>, vector<1x128xf32>
    %170 = arith.subf %123, %169 : vector<1x128xf32>
    %c0_75 = arith.constant 0 : index
    %c0_76 = arith.constant 0 : index
    %c0_77 = arith.constant 0 : index
    %171 = vector.load %arg5[%c0_75, %c0_76, %c0_77] : memref<5x1x128xf32, #tpu.memory_space<vmem>>, vector<1x1x128xf32>
    %172 = vector.shape_cast %171 : vector<1x1x128xf32> to vector<1x128xf32>
    %c1_78 = arith.constant 1 : index
    %c0_79 = arith.constant 0 : index
    %c0_80 = arith.constant 0 : index
    %173 = vector.load %arg5[%c1_78, %c0_79, %c0_80] : memref<5x1x128xf32, #tpu.memory_space<vmem>>, vector<1x1x128xf32>
    %174 = vector.shape_cast %173 : vector<1x1x128xf32> to vector<1x128xf32>
    %c2_81 = arith.constant 2 : index
    %c0_82 = arith.constant 0 : index
    %c0_83 = arith.constant 0 : index
    %175 = vector.load %arg5[%c2_81, %c0_82, %c0_83] : memref<5x1x128xf32, #tpu.memory_space<vmem>>, vector<1x1x128xf32>
    %176 = vector.shape_cast %175 : vector<1x1x128xf32> to vector<1x128xf32>
    %c3_84 = arith.constant 3 : index
    %c0_85 = arith.constant 0 : index
    %c0_86 = arith.constant 0 : index
    %177 = vector.load %arg5[%c3_84, %c0_85, %c0_86] : memref<5x1x128xf32, #tpu.memory_space<vmem>>, vector<1x1x128xf32>
    %178 = vector.shape_cast %177 : vector<1x1x128xf32> to vector<1x128xf32>
    %c4_87 = arith.constant 4 : index
    %c0_88 = arith.constant 0 : index
    %c0_89 = arith.constant 0 : index
    %179 = vector.load %arg5[%c4_87, %c0_88, %c0_89] : memref<5x1x128xf32, #tpu.memory_space<vmem>>, vector<1x1x128xf32>
    %180 = vector.shape_cast %179 : vector<1x1x128xf32> to vector<1x128xf32>
    %181 = arith.maximumf %172, %174 : vector<1x128xf32>
    %182 = arith.maximumf %181, %176 : vector<1x128xf32>
    %183 = arith.maximumf %182, %178 : vector<1x128xf32>
    %184 = arith.maximumf %183, %180 : vector<1x128xf32>
    %185 = arith.subf %172, %184 : vector<1x128xf32>
    %186 = arith.subf %174, %184 : vector<1x128xf32>
    %187 = arith.subf %176, %184 : vector<1x128xf32>
    %188 = arith.subf %178, %184 : vector<1x128xf32>
    %189 = arith.subf %180, %184 : vector<1x128xf32>
    %190 = math.exp %185 : vector<1x128xf32>
    %191 = math.exp %186 : vector<1x128xf32>
    %192 = arith.addf %190, %191 : vector<1x128xf32>
    %193 = math.exp %187 : vector<1x128xf32>
    %194 = arith.addf %192, %193 : vector<1x128xf32>
    %195 = math.exp %188 : vector<1x128xf32>
    %196 = arith.addf %194, %195 : vector<1x128xf32>
    %197 = math.exp %189 : vector<1x128xf32>
    %198 = arith.addf %196, %197 : vector<1x128xf32>
    %199 = math.log %198 : vector<1x128xf32>
    %cst_90 = arith.constant 0.000000e+00 : f32
    %200 = vector.broadcast %cst_90 : f32 to vector<1x128xf32>
    %201 = arith.select %7, %185, %200 : vector<1x128xi1>, vector<1x128xf32>
    %cst_91 = arith.constant 0.000000e+00 : f32
    %202 = vector.broadcast %cst_91 : f32 to vector<1x128xf32>
    %203 = arith.select %9, %186, %202 : vector<1x128xi1>, vector<1x128xf32>
    %204 = arith.addf %201, %203 : vector<1x128xf32>
    %cst_92 = arith.constant 0.000000e+00 : f32
    %205 = vector.broadcast %cst_92 : f32 to vector<1x128xf32>
    %206 = arith.select %11, %187, %205 : vector<1x128xi1>, vector<1x128xf32>
    %207 = arith.addf %204, %206 : vector<1x128xf32>
    %cst_93 = arith.constant 0.000000e+00 : f32
    %208 = vector.broadcast %cst_93 : f32 to vector<1x128xf32>
    %209 = arith.select %13, %188, %208 : vector<1x128xi1>, vector<1x128xf32>
    %210 = arith.addf %207, %209 : vector<1x128xf32>
    %cst_94 = arith.constant 0.000000e+00 : f32
    %211 = vector.broadcast %cst_94 : f32 to vector<1x128xf32>
    %212 = arith.select %15, %189, %211 : vector<1x128xi1>, vector<1x128xf32>
    %213 = arith.addf %210, %212 : vector<1x128xf32>
    %214 = arith.subf %213, %199 : vector<1x128xf32>
    %cst_95 = arith.constant 0.000000e+00 : f32
    %215 = vector.broadcast %cst_95 : f32 to vector<1x128xf32>
    %216 = arith.select %5, %214, %215 : vector<1x128xi1>, vector<1x128xf32>
    %217 = arith.subf %170, %216 : vector<1x128xf32>
    %c4_96 = arith.constant 4 : index
    %c0_97 = arith.constant 0 : index
    %c0_98 = arith.constant 0 : index
    %218 = vector.load %arg6[%c4_96, %c0_97, %c0_98] : memref<5x1x128xf32, #tpu.memory_space<vmem>>, vector<1x1x128xf32>
    %219 = vector.shape_cast %218 : vector<1x1x128xf32> to vector<1x128xf32>
    %220 = arith.mulf %39, %217 : vector<1x128xf32>
    %221 = arith.addf %219, %220 : vector<1x128xf32>
    %c4_99 = arith.constant 4 : index
    %c0_100 = arith.constant 0 : index
    %c0_101 = arith.constant 0 : index
    %222 = vector.load %arg6[%c4_99, %c0_100, %c0_101] : memref<5x1x128xf32, #tpu.memory_space<vmem>>, vector<1x1x128xf32>
    %223 = vector.shape_cast %222 : vector<1x1x128xf32> to vector<1x128xf32>
    %224 = vector.shape_cast %221 : vector<1x128xf32> to vector<1x1x128xf32>
    tpu.vector_store %arg6[%c4_99, %c0_100, %c0_101], %224 {strides = array<i32>} : memref<5x1x128xf32, #tpu.memory_space<vmem>>, vector<1x1x128xf32>,
    return
  }
  func.func @transform_0(%arg0: i32, %arg1: i32) -> (i32, i32) {
    %c1_i32 = arith.constant 1 : i32
    %0 = arith.muli %arg0, %c1_i32 : i32
    %1 = arith.addi %0, %arg1 : i32
    %c0_i32 = arith.constant 0 : i32
    %c0_i32_0 = arith.constant 0 : i32
    return %1, %c0_i32 : i32, i32
  }
  func.func @transform_1(%arg0: i32, %arg1: i32) -> (i32, i32, i32) {
    %c1_i32 = arith.constant 1 : i32
    %0 = arith.muli %arg0, %c1_i32 : i32
    %1 = arith.addi %0, %arg1 : i32
    %c0_i32 = arith.constant 0 : i32
    %2 = arith.minsi %1, %c0_i32 : i32
    %c0_i32_0 = arith.constant 0 : i32
    %c0_i32_1 = arith.constant 0 : i32
    %c0_i32_2 = arith.constant 0 : i32
    return %c0_i32_0, %2, %c0_i32_1 : i32, i32, i32
  }
  func.func @transform_2(%arg0: i32, %arg1: i32) -> (i32, i32, i32) {
    %c1_i32 = arith.constant 1 : i32
    %0 = arith.muli %arg0, %c1_i32 : i32
    %1 = arith.addi %0, %arg1 : i32
    %c0_i32 = arith.constant 0 : i32
    %2 = arith.minsi %1, %c0_i32 : i32
    %c0_i32_0 = arith.constant 0 : i32
    %c0_i32_1 = arith.constant 0 : i32
    %c0_i32_2 = arith.constant 0 : i32
    return %c0_i32_0, %2, %c0_i32_1 : i32, i32, i32
  }
  func.func @transform_3(%arg0: i32, %arg1: i32) -> (i32, i32, i32) {
    %c1_i32 = arith.constant 1 : i32
    %0 = arith.muli %arg0, %c1_i32 : i32
    %1 = arith.addi %0, %arg1 : i32
    %c0_i32 = arith.constant 0 : i32
    %2 = arith.minsi %1, %c0_i32 : i32
    %c0_i32_0 = arith.constant 0 : i32
    %c0_i32_1 = arith.constant 0 : i32
    %c0_i32_2 = arith.constant 0 : i32
    return %c0_i32_0, %2, %c0_i32_1 : i32, i32, i32
  }
  func.func @transform_4(%arg0: i32, %arg1: i32) -> (i32, i32, i32) {
    %c0_i32 = arith.constant 0 : i32
    %c0_i32_0 = arith.constant 0 : i32
    %c0_i32_1 = arith.constant 0 : i32
    return %c0_i32, %arg0, %c0_i32_0 : i32, i32, i32
  }
}

</mosaic_0001>

<llo_original>
// kernel: tpu_custom_call.1
$region0: #{tpu_custom_call.1}
  #allocation0 [shape = 'u32[]', space=smem, size = 0x4, offset = 0x4, fixed_abs, tag = 'smem constant byte address 0x4 - core index']
  #allocation1 [shape = 'u32[144,128]{1,0:T(1,128)}', space=vmem, size = 0x12000, scoped, tag = 'internal scratch']
  %s0 = inlined_call_operand.hbm [shape: s32[1,128], index: 0, kind: input, shape index: {}]
  %s1 = inlined_call_operand.hbm [shape: f32[5,1,128], index: 1, kind: input, shape index: {}]
  %s2 = inlined_call_operand.vmem [shape: f32[5,1,128], index: 2, kind: input, shape index: {}]
  %s3 = inlined_call_operand.vmem [shape: f32[5,1,128], index: 3, kind: input, shape index: {}]
  %s4 = inlined_call_operand.hbm [shape: f32[5,1,128], index: 4, kind: output, shape index: {}]
  %s5 = sld [smem:[#allocation0]]
  $region38: #{tpu_custom_call.1} parent=0
    _
  %s7 = ssub.s32 1, %s5
  %s8 = scalar_select 0, %s7, %s5
  $region1: #{tpu_custom_call.1} parent=0
    #allocation2 [shape = 'u8[512]{0}', space=vmem, size = 0x400, scoped, tag = 'input window, operand 0, single buffered']
    #allocation3 [shape = 's32[1]{0}', space=sflag, size = 0x4, scoped, tag = 'scoped memory for tpu_custom_call.1']
    #allocation4 [shape = 's32[1]{0}', space=sflag, size = 0x4, scoped, tag = 'scoped memory for tpu_custom_call.1']
    #allocation5 [shape = 'u8[2560]{0}', space=vmem, size = 0xc00, scoped, tag = 'input window, operand 1, single buffered']
    #allocation6 [shape = 's32[1]{0}', space=sflag, size = 0x4, scoped, tag = 'scoped memory for tpu_custom_call.1']
    #allocation7 [shape = 'u8[2560]{0}', space=vmem, size = 0xc00, scoped, tag = 'output window, operand 0, single buffered']
    %9 = vsyncpa [#allocation3], 0
    %10 = vsyncpa [#allocation6], 0
    %11 = vsyncpa [#allocation4], 0
    // Predicated region
    $region2: #{tpu_custom_call.1} parent=1 // pred_check
      _
    $region3: #{tpu_custom_call.1} parent=1 // pred_check_branch
      %13 = sbr.rel (0) target = $region5
    $region4: #{tpu_custom_call.1} parent=1 // pred_region
      %s14 = sadd.s32 0, 0
      %s16 = ssub.s32 16, 16
      %17 = vsyncadd [#allocation3], %s16
      %s18 = smul.addr %s14, 16
      %s19 = scalar_lea.hbm %s0, %s18
      %s21 = sshll.u32 [#allocation2], 4
      %s22 = int_to_ptr.vmem [resolvable:$true] %s21
      %24 = dma.hbm_to_vmem [thread:$0]  %s19, 16, %s22, [#allocation3]
    $region5: #{tpu_custom_call.1} parent=1 // pred_fallthru
      _
    // Predicated region
    $region6: #{tpu_custom_call.1} parent=1 // pred_check
      _
    $region7: #{tpu_custom_call.1} parent=1 // pred_check_branch
      %26 = sbr.rel (0) target = $region9
    $region8: #{tpu_custom_call.1} parent=1 // pred_region
      %s27 = sadd.s32 0, 0
      %p28 = scmp.lt.s32.totalorder %s27, 0
      %s29 = scalar_select %p28, %s27, 0
      %s31 = ssub.s32 80, 80
      %32 = vsyncadd [#allocation6], %s31
      %s33 = smul.addr %s29, 16
      %s34 = scalar_lea.hbm %s1, %s33
      %s35 = sshll.u32 [#allocation5], 4
      %s36 = int_to_ptr.vmem [resolvable:$true] %s35
      %41 = dma.hbm_to_vmem [thread:$0]  %s34, 80, %s36, [#allocation6], 16, 16, 1
    $region9: #{tpu_custom_call.1} parent=1 // pred_fallthru
      _
    // Predicated region
    $region10: #{tpu_custom_call.1} parent=1 // pred_check
      _
    $region11: #{tpu_custom_call.1} parent=1 // pred_check_branch
      %43 = sbr.rel (0) target = $region13
    $region12: #{tpu_custom_call.1} parent=1 // pred_region
      %s44 = sadd.s32 0, 0
      %p45 = scmp.lt.s32.totalorder %s44, 0
      %s46 = scalar_select %p45, %s44, 0
      %p47 = scmp.lt.s32.totalorder %s46, 0
      %s48 = scalar_select %p47, %s46, 0
      %s49 = scalar_lea.vmem %s2, %s48
      %s50 = sadd.s32 0, 0
      %p51 = scmp.lt.s32.totalorder %s50, 0
      %s52 = scalar_select %p51, %s50, 0
    $region13: #{tpu_custom_call.1} parent=1 // pred_fallthru
      _
    // Predicated region
    $region14: #{tpu_custom_call.1} parent=1 // pred_check
      _
    $region15: #{tpu_custom_call.1} parent=1 // pred_check_branch
      %54 = sbr.rel (0) target = $region17
    $region16: #{tpu_custom_call.1} parent=1 // pred_region
      %s55 = sadd.s32 0, 0
      %p56 = scmp.lt.s32.totalorder %s55, 0
      %s57 = scalar_select %p56, %s55, 0
      %p58 = scmp.lt.s32.totalorder %s57, 0
      %s59 = scalar_select %p58, %s57, 0
      %s60 = scalar_lea.vmem %s3, %s59
      %s61 = sadd.s32 0, 0
      %p62 = scmp.lt.s32.totalorder %s61, 0
      %s63 = scalar_select %p62, %s61, 0
    $region17: #{tpu_custom_call.1} parent=1 // pred_fallthru
      _
    // Predicated region
    $region18: #{tpu_custom_call.1} parent=1 // pred_check
      _
    $region19: #{tpu_custom_call.1} parent=1 // pred_check_branch
      %65 = sbr.rel (0) target = $region21
    $region20: #{tpu_custom_call.1} parent=1 // pred_region
      %66 = dma.done [#allocation3], 16
    $region21: #{tpu_custom_call.1} parent=1 // pred_fallthru
      _
    // Predicated region
    $region22: #{tpu_custom_call.1} parent=1 // pred_check
      _
    $region23: #{tpu_custom_call.1} parent=1 // pred_check_branch
      %68 = sbr.rel (0) target = $region25
    $region24: #{tpu_custom_call.1} parent=1 // pred_region
      %69 = dma.done [#allocation6], 80
    $region25: #{tpu_custom_call.1} parent=1 // pred_fallthru
      _
    %s70 = sadd.s32 0, 0
    %p71 = scmp.lt.s32.totalorder %s70, 0
    %s72 = scalar_select %p71, %s70, 0
    %p73 = scmp.lt.s32.totalorder %s72, 0
    %s74 = scalar_select %p73, %s72, 0
    %s75 = scalar_lea.vmem %s2, %s74
    %s76 = sadd.s32 0, 0
    %p77 = scmp.lt.s32.totalorder %s76, 0
    %s78 = scalar_select %p77, %s76, 0
    %p79 = scmp.lt.s32.totalorder %s78, 0
    %s80 = scalar_select %p79, %s78, 0
    %s81 = scalar_lea.vmem %s3, %s80
    %s82 = sadd.s32 0, 0
    %s83 = sadd.s32 0, 0
    %p84 = scmp.lt.s32.totalorder %s83, 0
    %s85 = scalar_select %p84, %s83, 0
    %s86 = sadd.s32 0, 0
    %p87 = scmp.lt.s32.totalorder %s86, 0
    %s88 = scalar_select %p87, %s86, 0
    %p89 = scmp.lt.s32.totalorder %s88, 0
    %s90 = scalar_select %p89, %s88, 0
    %s91 = scalar_lea.vmem %s2, %s90
    %s92 = sadd.s32 0, 0
    %p93 = scmp.lt.s32.totalorder %s92, 0
    %s94 = scalar_select %p93, %s92, 0
    %s95 = sadd.s32 0, 0
    %p96 = scmp.lt.s32.totalorder %s95, 0
    %s97 = scalar_select %p96, %s95, 0
    %p98 = scmp.lt.s32.totalorder %s97, 0
    %s99 = scalar_select %p98, %s97, 0
    %s100 = scalar_lea.vmem %s3, %s99
    %s101 = sadd.s32 0, 0
    %p102 = scmp.lt.s32.totalorder %s101, 0
    %s103 = scalar_select %p102, %s101, 0
    %p104 = scmp.eq.s32.totalorder 0, 0
    // Predicated region
    $region26: #{tpu_custom_call.1} parent=1 // pred_check
      %p105 = pneg %p104
    $region27: #{tpu_custom_call.1} parent=1 // pred_check_branch
      %107 = sbr.rel (%p105) target = $region29
    $region28: #{tpu_custom_call.1} parent=1 // pred_region
      %108 = vst [vmem:[#allocation7] sm:$0x1] 0.0
      %109 = vst [vmem:[#allocation7 + $0x1] sm:$0x1] 0.0
      %110 = vst [vmem:[#allocation7 + $0x2] sm:$0x1] 0.0
      %111 = vst [vmem:[#allocation7 + $0x3] sm:$0x1] 0.0
      %112 = vst [vmem:[#allocation7 + $0x4] sm:$0x1] 0.0
    $region29: #{tpu_custom_call.1} parent=1 // pred_fallthru
      _
    %v113 = vld [vmem:[#allocation2] sm:$0x1]
    %vm114 = vcmp.ge.s32.totalorder %v113, 0
    %vm115 = vcmp.eq.s32.totalorder %v113, 0
    %vm116 = vcmp.eq.s32.totalorder %v113, 1
    %vm117 = vcmp.eq.s32.totalorder %v113, 2
    %vm118 = vcmp.eq.s32.totalorder %v113, 3
    %vm119 = vcmp.eq.s32.totalorder %v113, 4
    %v120 = vsel %vm115, 1, 0
    %v121 = vcvt.s32.f32 %v120
    %v122 = vsel %vm116, 1, 0
    %v123 = vcvt.s32.f32 %v122
    %v124 = vsel %vm117, 1, 0
    %v125 = vcvt.s32.f32 %v124
    %v126 = vsel %vm118, 1, 0
    %v127 = vcvt.s32.f32 %v126
    %v128 = vsel %vm119, 1, 0
    %v129 = vcvt.s32.f32 %v128
    %v130 = vmul.f32 %v121, 0.15873939
    %v131 = vmul.f32 %v123, 0.3469199
    %v132 = vadd.f32 %v130, %v131
    %v133 = vmul.f32 %v125, 0.23936558
    %v134 = vadd.f32 %v132, %v133
    %v135 = vmul.f32 %v127, 0.47936356
    %v136 = vadd.f32 %v134, %v135
    %v137 = vmul.f32 %v129, 3.7756114
    %v138 = vadd.f32 %v136, %v137
    %v139 = vld [vmem:[#allocation5] sm:$0x1]
    %s140 = scalar_lea.vmem [#allocation5], 1
    %v141 = vld [vmem:[%s140] sm:$0x1]
    %s142 = scalar_lea.vmem [#allocation5], 2
    %v143 = vld [vmem:[%s142] sm:$0x1]
    %s144 = scalar_lea.vmem [#allocation5], 3
    %v145 = vld [vmem:[%s144] sm:$0x1]
    %s146 = scalar_lea.vmem [#allocation5], 4
    %v147 = vld [vmem:[%s146] sm:$0x1]
    %v148 = vmax.f32 %v139, %v141
    %v149 = vmax.f32 %v148, %v143
    %v150 = vmax.f32 %v149, %v145
    %v151 = vmax.f32 %v150, %v147
    %v152 = vsub.f32 %v139, %v151
    %v153 = vsub.f32 %v141, %v151
    %v154 = vsub.f32 %v143, %v151
    %v155 = vsub.f32 %v145, %v151
    %v156 = vsub.f32 %v147, %v151
    %v157 = vmul.f32 %v152, 1.442695
    %v158 = vpow.pop %v157
    %v159 = vmul.f32 %v153, 1.442695
    %v160 = vpow.pop %v159
    %v161 = vadd.f32 %v158, %v160
    %v162 = vmul.f32 %v154, 1.442695
    %v163 = vpow.pop %v162
    %v164 = vadd.f32 %v161, %v163
    %v165 = vmul.f32 %v155, 1.442695
    %v166 = vpow.pop %v165
    %v167 = vadd.f32 %v164, %v166
    %v168 = vmul.f32 %v156, 1.442695
    %v169 = vpow.pop %v168
    %v170 = vadd.f32 %v167, %v169
    %v171 = vlog2.pop %v170
    %v172 = vmul.f32 %v171, 0.6931472
    %v173 = vsel %vm115, %v152, 0.0
    %v174 = vsel %vm116, %v153, 0.0
    %v175 = vadd.f32 %v173, %v174
    %v176 = vsel %vm117, %v154, 0.0
    %v177 = vadd.f32 %v175, %v176
    %v178 = vsel %vm118, %v155, 0.0
    %v179 = vadd.f32 %v177, %v178
    %v180 = vsel %vm119, %v156, 0.0
    %v181 = vadd.f32 %v179, %v180
    %v182 = vsub.f32 %v181, %v172
    %v183 = vsel %vm114, %v182, 0.0
    %v184 = vmul.f32 %v183, 1.442695
    %v185 = vpow.pop %v184
    %v186 = vsub.f32 1.0, %v185
    %v187 = vmul.f32 %v186, %v186
    %v188 = vmul.f32 %v129, 0.5
    %v189 = vadd.f32 %v188, 1.0
    %v190 = vld [vmem:[#allocation7] sm:$0x1]
    %v191 = vadd.f32 %v190, %v138
    %192 = vst [vmem:[#allocation7] sm:$0x1] %v191
    %s193 = scalar_lea.vmem [#allocation7], 1
    %v194 = vld [vmem:[%s193] sm:$0x1]
    %v195 = vmul.f32 %v189, %v187
    %v196 = vmul.f32 %v195, %v183
    %v197 = vadd.f32 %v194, %v196
    %198 = vst [vmem:[%s193] sm:$0x1] %v197
    %s199 = scalar_lea.vmem [#allocation7], 2
    %v200 = vld [vmem:[%s199] sm:$0x1]
    %v201 = vsub.f32 0.0, %v183
    %v202 = vmul.f32 %v129, %v201
    %v203 = vadd.f32 %v200, %v202
    %204 = vst [vmem:[%s199] sm:$0x1] %v203
    %s205 = scalar_lea.vmem [#allocation7], 3
    %v206 = vld [vmem:[%s205] sm:$0x1]
    %v207 = vadd.f32 %v206, %v129
    %208 = vst [vmem:[%s205] sm:$0x1] %v207
    %v209 = vld [vmem:[%s91] sm:$0x1]
    %s210 = scalar_lea.vmem %s91, 1
    %v211 = vld [vmem:[%s210] sm:$0x1]
    %s212 = scalar_lea.vmem %s91, 2
    %v213 = vld [vmem:[%s212] sm:$0x1]
    %s214 = scalar_lea.vmem %s91, 3
    %v215 = vld [vmem:[%s214] sm:$0x1]
    %s216 = scalar_lea.vmem %s91, 4
    %v217 = vld [vmem:[%s216] sm:$0x1]
    %v218 = vmax.f32 %v209, %v211
    %v219 = vmax.f32 %v218, %v213
    %v220 = vmax.f32 %v219, %v215
    %v221 = vmax.f32 %v220, %v217
    %v222 = vsub.f32 %v209, %v221
    %v223 = vsub.f32 %v211, %v221
    %v224 = vsub.f32 %v213, %v221
    %v225 = vsub.f32 %v215, %v221
    %v226 = vsub.f32 %v217, %v221
    %v227 = vmul.f32 %v222, 1.442695
    %v228 = vpow.pop %v227
    %v229 = vmul.f32 %v223, 1.442695
    %v230 = vpow.pop %v229
    %v231 = vadd.f32 %v228, %v230
    %v232 = vmul.f32 %v224, 1.442695
    %v233 = vpow.pop %v232
    %v234 = vadd.f32 %v231, %v233
    %v235 = vmul.f32 %v225, 1.442695
    %v236 = vpow.pop %v235
    %v237 = vadd.f32 %v234, %v236
    %v238 = vmul.f32 %v226, 1.442695
    %v239 = vpow.pop %v238
    %v240 = vadd.f32 %v237, %v239
    %v241 = vlog2.pop %v240
    %v242 = vmul.f32 %v241, 0.6931472
    %v243 = vsel %vm115, %v222, 0.0
    %v244 = vsel %vm116, %v223, 0.0
    %v245 = vadd.f32 %v243, %v244
    %v246 = vsel %vm117, %v224, 0.0
    %v247 = vadd.f32 %v245, %v246
    %v248 = vsel %vm118, %v225, 0.0
    %v249 = vadd.f32 %v247, %v248
    %v250 = vsel %vm119, %v226, 0.0
    %v251 = vadd.f32 %v249, %v250
    %v252 = vsub.f32 %v251, %v242
    %v253 = vsel %vm114, %v252, 0.0
    %v254 = vsub.f32 0.0, %v253
    %v255 = vld [vmem:[%s100] sm:$0x1]
    %s256 = scalar_lea.vmem %s100, 1
    %v257 = vld [vmem:[%s256] sm:$0x1]
    %s258 = scalar_lea.vmem %s100, 2
    %v259 = vld [vmem:[%s258] sm:$0x1]
    %s260 = scalar_lea.vmem %s100, 3
    %v261 = vld [vmem:[%s260] sm:$0x1]
    %s262 = scalar_lea.vmem %s100, 4
    %v263 = vld [vmem:[%s262] sm:$0x1]
    %v264 = vmax.f32 %v255, %v257
    %v265 = vmax.f32 %v264, %v259
    %v266 = vmax.f32 %v265, %v261
    %v267 = vmax.f32 %v266, %v263
    %v268 = vsub.f32 %v255, %v267
    %v269 = vsub.f32 %v257, %v267
    %v270 = vsub.f32 %v259, %v267
    %v271 = vsub.f32 %v261, %v267
    %v272 = vsub.f32 %v263, %v267
    %v273 = vmul.f32 %v268, 1.442695
    %v274 = vpow.pop %v273
    %v275 = vmul.f32 %v269, 1.442695
    %v276 = vpow.pop %v275
    %v277 = vadd.f32 %v274, %v276
    %v278 = vmul.f32 %v270, 1.442695
    %v279 = vpow.pop %v278
    %v280 = vadd.f32 %v277, %v279
    %v281 = vmul.f32 %v271, 1.442695
    %v282 = vpow.pop %v281
    %v283 = vadd.f32 %v280, %v282
    %v284 = vmul.f32 %v272, 1.442695
    %v285 = vpow.pop %v284
    %v286 = vadd.f32 %v283, %v285
    %v287 = vlog2.pop %v286
    %v288 = vmul.f32 %v287, 0.6931472
    %v289 = vsel %vm115, %v268, 0.0
    %v290 = vsel %vm116, %v269, 0.0
    %v291 = vadd.f32 %v289, %v290
    %v292 = vsel %vm117, %v270, 0.0
    %v293 = vadd.f32 %v291, %v292
    %v294 = vsel %vm118, %v271, 0.0
    %v295 = vadd.f32 %v293, %v294
    %v296 = vsel %vm119, %v272, 0.0
    %v297 = vadd.f32 %v295, %v296
    %v298 = vsub.f32 %v297, %v288
    %v299 = vsel %vm114, %v298, 0.0
    %v300 = vsub.f32 %v254, %v299
    %s301 = scalar_lea.vmem [#allocation7], 4
    %v302 = vld [vmem:[%s301] sm:$0x1]
    %v303 = vmul.f32 %v138, %v300
    %v304 = vadd.f32 %v302, %v303
    %305 = vst [vmem:[%s301] sm:$0x1] %v304
    // Predicated region
    $region30: #{tpu_custom_call.1} parent=1 // pred_check
      _
    $region31: #{tpu_custom_call.1} parent=1 // pred_check_branch
      %307 = sbr.rel (0) target = $region33
    $region32: #{tpu_custom_call.1} parent=1 // pred_region
      %s309 = ssub.s32 80, 80
      %310 = vsyncadd [#allocation4], %s309
      %s311 = sshll.u32 [#allocation7], 4
      %s312 = int_to_ptr.vmem [resolvable:$true] %s311
      %317 = dma.vmem_to_hbm [thread:$0]  %s312, 80, %s4, [#allocation4], 16, 16, 1
    $region33: #{tpu_custom_call.1} parent=1 // pred_fallthru
      _
    // Predicated region
    $region34: #{tpu_custom_call.1} parent=1 // pred_check
      _
    $region35: #{tpu_custom_call.1} parent=1 // pred_check_branch
      %319 = sbr.rel (0) target = $region37
    $region36: #{tpu_custom_call.1} parent=1 // pred_region
      %320 = dma.done [#allocation4], 80
    $region37: #{tpu_custom_call.1} parent=1 // pred_fallthru
      _
    %321 = vsyncpa [#allocation3], 1
    %322 = vsyncpa [#allocation6], 1
    %323 = vsyncpa [#allocation4], 1

</llo_original>
